<compile_context>
chip_gen: v7x
topology: tpu7x:2x2x1
jax: 0.10.0
libtpu: 0.0.40
codegen_flags: <defaults>
</compile_context>

<pallas_src>
import functools

import jax
import jax.numpy as jnp
from jax.experimental import pallas as pl
from jax.experimental.pallas import tpu as pltpu


def _row_tile(M, cap=512):
    """Largest row tile <= cap (multiple of 8 when tiling, full M otherwise)."""
    if M <= cap:
        return M
    return (cap // 8) * 8


# ---------------------------------------------------------------------------
# Fused spatial-reduction: patch-matmul (== Conv2d(C, C, sr, sr)) + bias + LayerNorm
# ---------------------------------------------------------------------------
def _sr_linear_ln_kernel(x_ref, w_ref, b_ref, g_ref, beta_ref, o_ref, *, eps):
    y = jnp.dot(x_ref[...], w_ref[...], preferred_element_type=jnp.float32)
    y = y + b_ref[...]
    mu = jnp.mean(y, axis=-1, keepdims=True)
    yc = y - mu
    var = jnp.mean(yc * yc, axis=-1, keepdims=True)
    inv = jax.lax.rsqrt(var + eps)
    o_ref[...] = (yc * inv * g_ref[...] + beta_ref[...]).astype(o_ref.dtype)


def sr_linear_layernorm(xp, w_t, b, gamma, beta, eps=1e-5):
    """xp: (M, Cin) patch matrix; w_t: (Cin, Cout); returns LayerNorm(xp @ w_t + b)."""
    M, Cin = xp.shape
    Cout = w_t.shape[1]
    tm = _row_tile(M)
    grid = (pl.cdiv(M, tm),)
    return pl.pallas_call(
        functools.partial(_sr_linear_ln_kernel, eps=eps),
        out_shape=jax.ShapeDtypeStruct((M, Cout), xp.dtype),
        grid_spec=pltpu.PrefetchScalarGridSpec(
            num_scalar_prefetch=0,
            grid=grid,
            in_specs=[
                pl.BlockSpec((tm, Cin), lambda i: (i, 0)),
                pl.BlockSpec((Cin, Cout), lambda i: (0, 0)),
                pl.BlockSpec((1, Cout), lambda i: (0, 0)),
                pl.BlockSpec((1, Cout), lambda i: (0, 0)),
                pl.BlockSpec((1, Cout), lambda i: (0, 0)),
            ],
            out_specs=pl.BlockSpec((tm, Cout), lambda i: (i, 0)),
        ),
        compiler_params=pltpu.CompilerParams(
            dimension_semantics=("parallel",),
            vmem_limit_bytes=32 * 1024 * 1024,
        ),
    )(xp, w_t, b.reshape(1, Cout), gamma.reshape(1, Cout), beta.reshape(1, Cout))


# ---------------------------------------------------------------------------
# Fused attention kernel: q proj + kv proj + per-head softmax attention + out proj
# ---------------------------------------------------------------------------
def _fused_attn_kernel(xq_ref, xs_ref, wq_ref, bq_ref, wk_ref, bk_ref,
                       wv_ref, bv_ref, wp_ref, bp_ref, o_ref,
                       k_sc, v_sc, stage_sc, *, scale, head, dh):
    f32 = jnp.float32
    xq = xq_ref[0]                     # (tq, C) — q-tile of the input, C-last lane-dense
    xs = xs_ref[0]                     # (Nk, C) — (possibly spatially reduced) kv input

    # Fused projections: weights resident in VMEM, full-C contractions on the MXU.
    q = jnp.dot(xq, wq_ref[...], preferred_element_type=f32) + bq_ref[...]
    k_sc[...] = jnp.dot(xs, wk_ref[...], preferred_element_type=f32) + bk_ref[...]
    v_sc[...] = jnp.dot(xs, wv_ref[...], preferred_element_type=f32) + bv_ref[...]
    q = q * scale                      # fold the scale into q (cheaper than scaling scores)

    # Per-head attention; each head's PV result is stored to the (tq, C) staging scratch
    # (memory write bounds that head's live temps) so the output projection is ONE
    # full-depth (tq, C) @ (C, C) MXU dot instead of `head` dh-deep dots.
    for h in range(head):
        sl = slice(h * dh, (h + 1) * dh)
        qh = q[:, sl]                  # (tq, dh)
        kh = k_sc[:, sl]               # (Nk, dh)
        vh = v_sc[:, sl]               # (Nk, dh)
        s = jax.lax.dot_general(qh, kh, (((1,), (1,)), ((), ())),
                                preferred_element_type=f32)        # (tq, Nk)
        m = jnp.max(s, axis=-1, keepdims=True)
        p = jnp.exp(s - m)
        l = jnp.sum(p, axis=-1, keepdims=True)
        oh = jnp.dot(p, vh, preferred_element_type=f32)            # (tq, dh)
        # Normalize after the PV matmul: (tq, dh) multiply + EUP reciprocal instead of
        # a (tq, Nk) VALU divide.
        stage_sc[:, sl] = oh * pl.reciprocal(l, approx=True)

    out = jnp.dot(stage_sc[...], wp_ref[...], preferred_element_type=f32) + bp_ref[...]
    o_ref[0] = out.astype(o_ref.dtype)


def fused_attention(xq, xs, params, *, head, scale):
    """xq: (B, N, C) attention input (for q); xs: (B, Nk, C) kv input."""
    B, N, C = xq.shape
    Nk = xs.shape[1]
    dh = C // head
    tq = _row_tile(N, cap=512)
    n_qt = pl.cdiv(N, tq)

    kernel = functools.partial(_fused_attn_kernel, scale=scale, head=head, dh=dh)
    weight_spec = pl.BlockSpec((C, C), lambda b, qt: (0, 0))
    bias_spec = pl.BlockSpec((1, C), lambda b, qt: (0, 0))

    return pl.pallas_call(
        kernel,
        out_shape=jax.ShapeDtypeStruct((B, N, C), xq.dtype),
        grid_spec=pltpu.PrefetchScalarGridSpec(
            num_scalar_prefetch=0,
            grid=(B, n_qt),
            in_specs=[
                pl.BlockSpec((1, tq, C), lambda b, qt: (b, qt, 0)),   # xq tile
                pl.BlockSpec((1, Nk, C), lambda b, qt: (b, 0, 0)),    # xs (full per batch)
                weight_spec, bias_spec,                               # wq, bq
                weight_spec, bias_spec,                               # wk, bk
                weight_spec, bias_spec,                               # wv, bv
                weight_spec, bias_spec,                               # wp, bp
            ],
            out_specs=pl.BlockSpec((1, tq, C), lambda b, qt: (b, qt, 0)),
            scratch_shapes=[
                pltpu.VMEM((Nk, C), jnp.float32),   # k
                pltpu.VMEM((Nk, C), jnp.float32),   # v
                pltpu.VMEM((tq, C), jnp.float32),   # staged per-head PV results
            ],
        ),
        compiler_params=pltpu.CompilerParams(
            dimension_semantics=("parallel", "parallel"),
            vmem_limit_bytes=32 * 1024 * 1024,
        ),
    )(xq, xs,
      params["wq_t"], params["bq"].reshape(1, C),
      params["wk_t"], params["bk"].reshape(1, C),
      params["wv_t"], params["bv"].reshape(1, C),
      params["wp_t"], params["bp"].reshape(1, C))


# ---------------------------------------------------------------------------
# Full forward (matches PyTorch Attention.forward, inference semantics)
# ---------------------------------------------------------------------------
def attention_forward(x, H, W, params, *, head, sr_ratio):
    B, N, C = x.shape
    dh = C // head
    scale = float(dh) ** -0.5

    if sr_ratio > 1:
        sr = sr_ratio
        Hs, Ws = H // sr, W // sr
        Nk = Hs * Ws
        # Strided conv (kernel == stride) == dense matmul on non-overlapping patches;
        # column order (Cin, kh, kw) matches Conv2d weight flattening.
        xp = (x.reshape(B, Hs, sr, Ws, sr, C)
                .transpose(0, 1, 3, 5, 2, 4)
                .reshape(B * Nk, C * sr * sr))
        xs = sr_linear_layernorm(xp, params["wsr_t"], params["bsr"],
                                 params["ln_g"], params["ln_b"])
        xs = xs.reshape(B, Nk, C)
    else:
        xs = x

    # NOTE: output last dim is C; if real-model C is not a multiple of 128 the final
    # stores are masked (matters most on v5e's single store slot).
    return fused_attention(x, xs, params, head=head, scale=scale)


# ---------------------------------------------------------------------------
# Pure-JAX reference (mirrors the PyTorch module)
# ---------------------------------------------------------------------------
def attention_ref(x, H, W, params, *, head, sr_ratio):
    B, N, C = x.shape
    dh = C // head
    scale = float(dh) ** -0.5
    q = (x @ params["wq_t"] + params["bq"]).reshape(B, N, head, dh).transpose(0, 2, 1, 3)
    if sr_ratio > 1:
        sr = sr_ratio
        Hs, Ws = H // sr, W // sr
        xp = (x.reshape(B, Hs, sr, Ws, sr, C)
                .transpose(0, 1, 3, 5, 2, 4)
                .reshape(B, Hs * Ws, C * sr * sr))
        xs = xp @ params["wsr_t"] + params["bsr"]
        mu = xs.mean(-1, keepdims=True)
        var = ((xs - mu) ** 2).mean(-1, keepdims=True)
        xs = (xs - mu) / jnp.sqrt(var + 1e-5) * params["ln_g"] + params["ln_b"]
    else:
        xs = x
    kv = xs @ params["wkv_t"] + params["bkv"]
    Nk = kv.shape[1]
    kv = kv.reshape(B, Nk, 2, head, dh).transpose(2, 0, 3, 1, 4)
    k, v = kv[0], kv[1]
    attn = jnp.einsum("bhqd,bhkd->bhqk", q, k) * scale
    attn = jax.nn.softmax(attn, axis=-1)
    o = jnp.einsum("bhqk,bhkd->bhqd", attn, v).transpose(0, 2, 1, 3).reshape(B, N, C)
    return o @ params["wp_t"] + params["bp"]


if __name__ == "__main__":
    key = jax.random.PRNGKey(0)
    ks = jax.random.split(key, 11)

    B, H, W, C, head, sr = 2, 8, 8, 32, 2, 2
    N = H * W

    x = jax.random.normal(ks[0], (B, N, C), dtype=jnp.float32)

    def w(k, shape, s=0.1):
        return jax.random.normal(k, shape, dtype=jnp.float32) * s

    # Weights stored pre-transposed to (in, out); the kv weight is split into separate
    # k / v slabs at parameter-prep time (no runtime (2,B,head,Nk,dh) HBM transposes).
    params = {
        "wq_t": w(ks[1], (C, C)),
        "bq": w(ks[2], (C,)),
        "wkv_t": w(ks[3], (C, 2 * C)),
        "bkv": w(ks[4], (2 * C,)),
        "wp_t": w(ks[5], (C, C)),
        "bp": w(ks[6], (C,)),
        # sr Conv2d(C, C, sr, sr) weight flattened (C, C*sr*sr) then transposed.
        "wsr_t": w(ks[7], (C * sr * sr, C)),
        "bsr": w(ks[8], (C,)),
        "ln_g": 1.0 + w(ks[9], (C,)),
        "ln_b": w(ks[10], (C,)),
    }
    params["wk_t"] = params["wkv_t"][:, :C]
    params["wv_t"] = params["wkv_t"][:, C:]
    params["bk"] = params["bkv"][:C]
    params["bv"] = params["bkv"][C:]

    # sr_ratio > 1 path (fused conv+LayerNorm kernel, then fused attention kernel)
    out = jax.block_until_ready(
        attention_forward(x, H, W, params, head=head, sr_ratio=sr))
    ref = attention_ref(x, H, W, params, head=head, sr_ratio=sr)
    assert out.shape == (B, N, C), out.shape
    err = float(jnp.max(jnp.abs(out - ref)))
    assert jnp.allclose(out, ref, atol=2e-2, rtol=2e-2), err

    # sr_ratio == 1 path (single fused attention kernel)
    out1 = jax.block_until_ready(
        attention_forward(x, H, W, params, head=head, sr_ratio=1))
    ref1 = attention_ref(x, H, W, params, head=head, sr_ratio=1)
    err1 = float(jnp.max(jnp.abs(out1 - ref1)))
    assert jnp.allclose(out1, ref1, atol=2e-2, rtol=2e-2), err1

    print("KERNEL_OK")
</pallas_src>

<mosaic_0001>
module attributes {stable_mosaic.version = 11 : i64} {
  func.func @_sr_linear_ln_kernel(%arg0: i32, %arg1: memref<32x128xf32, #tpu.memory_space<vmem>>, %arg2: memref<128x32xf32, #tpu.memory_space<vmem>>, %arg3: memref<1x32xf32, #tpu.memory_space<vmem>>, %arg4: memref<1x32xf32, #tpu.memory_space<vmem>>, %arg5: memref<1x32xf32, #tpu.memory_space<vmem>>, %arg6: memref<32x32xf32, #tpu.memory_space<vmem>>) attributes {dimension_semantics = [#tpu.dimension_semantics<parallel>], iteration_bounds = array<i64: 1>, scalar_prefetch = 0 : i64, scratch_operands = 0 : i64, tpu.core_type = #tpu.core_type<tc>, window_params = [{transform_indices = @transform_0, window_bounds = array<i64: 32, 128>}, {pipeline_mode = #tpu.pipeline_mode<synchronous>, transform_indices = @transform_1, window_bounds = array<i64: 128, 32>}, {pipeline_mode = #tpu.pipeline_mode<synchronous>, transform_indices = @transform_2, window_bounds = array<i64: 1, 32>}, {pipeline_mode = #tpu.pipeline_mode<synchronous>, transform_indices = @transform_3, window_bounds = array<i64: 1, 32>}, {pipeline_mode = #tpu.pipeline_mode<synchronous>, transform_indices = @transform_4, window_bounds = array<i64: 1, 32>}, {transform_indices = @transform_5, window_bounds = array<i64: 32, 32>}]} {
    %c0 = arith.constant 0 : index
    %c0_0 = arith.constant 0 : index
    %0 = vector.load %arg1[%c0, %c0_0] : memref<32x128xf32, #tpu.memory_space<vmem>>, vector<32x128xf32>
    %c0_1 = arith.constant 0 : index
    %c0_2 = arith.constant 0 : index
    %1 = vector.load %arg2[%c0_1, %c0_2] : memref<128x32xf32, #tpu.memory_space<vmem>>, vector<128x32xf32>
    %cst = arith.constant dense<0.000000e+00> : vector<32x32xf32>
    %2 = tpu.matmul %0, %1, %cst {dimension_numbers = #tpu.dot_dimension_numbers<[1], [0], [0], [1], [0, 0, 1, 1], [], []>} : vector<32x128xf32>, vector<128x32xf32>, vector<32x32xf32> -> vector<32x32xf32>
    %c0_3 = arith.constant 0 : index
    %c0_4 = arith.constant 0 : index
    %3 = vector.load %arg3[%c0_3, %c0_4] : memref<1x32xf32, #tpu.memory_space<vmem>>, vector<1x32xf32>
    %4 = vector.broadcast %3 : vector<1x32xf32> to vector<32x32xf32>
    %5 = arith.addf %2, %4 : vector<32x32xf32>
    %cst_5 = arith.constant dense<0.000000e+00> : vector<32xf32>
    %6 = vector.multi_reduction <add>, %5, %cst_5 [1] : vector<32x32xf32> to vector<32xf32>
    %7 = vector.shape_cast %6 : vector<32xf32> to vector<32x1xf32>
    %cst_6 = arith.constant 3.200000e+01 : f32
    %8 = vector.broadcast %cst_6 : f32 to vector<32x1xf32>
    %9 = arith.divf %7, %8 : vector<32x1xf32>
    %10 = vector.broadcast %9 : vector<32x1xf32> to vector<32x32xf32>
    %11 = arith.subf %5, %10 : vector<32x32xf32>
    %12 = arith.mulf %11, %11 : vector<32x32xf32>
    %cst_7 = arith.constant dense<0.000000e+00> : vector<32xf32>
    %13 = vector.multi_reduction <add>, %12, %cst_7 [1] : vector<32x32xf32> to vector<32xf32>
    %14 = vector.shape_cast %13 : vector<32xf32> to vector<32x1xf32>
    %cst_8 = arith.constant 3.200000e+01 : f32
    %15 = vector.broadcast %cst_8 : f32 to vector<32x1xf32>
    %16 = arith.divf %14, %15 : vector<32x1xf32>
    %cst_9 = arith.constant 9.99999974E-6 : f32
    %17 = vector.broadcast %cst_9 : f32 to vector<32x1xf32>
    %18 = arith.addf %16, %17 : vector<32x1xf32>
    %19 = math.rsqrt %18 : vector<32x1xf32>
    %20 = vector.broadcast %19 : vector<32x1xf32> to vector<32x32xf32>
    %21 = arith.mulf %11, %20 : vector<32x32xf32>
    %c0_10 = arith.constant 0 : index
    %c0_11 = arith.constant 0 : index
    %22 = vector.load %arg4[%c0_10, %c0_11] : memref<1x32xf32, #tpu.memory_space<vmem>>, vector<1x32xf32>
    %23 = vector.broadcast %22 : vector<1x32xf32> to vector<32x32xf32>
    %24 = arith.mulf %21, %23 : vector<32x32xf32>
    %c0_12 = arith.constant 0 : index
    %c0_13 = arith.constant 0 : index
    %25 = vector.load %arg5[%c0_12, %c0_13] : memref<1x32xf32, #tpu.memory_space<vmem>>, vector<1x32xf32>
    %26 = vector.broadcast %25 : vector<1x32xf32> to vector<32x32xf32>
    %27 = arith.addf %24, %26 : vector<32x32xf32>
    %c0_14 = arith.constant 0 : index
    %c0_15 = arith.constant 0 : index
    %28 = vector.load %arg6[%c0_14, %c0_15] : memref<32x32xf32, #tpu.memory_space<vmem>>, vector<32x32xf32>
    tpu.vector_store %arg6[%c0_14, %c0_15], %27 {strides = array<i32>} : memref<32x32xf32, #tpu.memory_space<vmem>>, vector<32x32xf32>,
    return
  }
  func.func @transform_0(%arg0: i32) -> (i32, i32) {
    %c0_i32 = arith.constant 0 : i32
    %c0_i32_0 = arith.constant 0 : i32
    return %arg0, %c0_i32 : i32, i32
  }
  func.func @transform_1(%arg0: i32) -> (i32, i32) {
    %c0_i32 = arith.constant 0 : i32
    %c0_i32_0 = arith.constant 0 : i32
    %c0_i32_1 = arith.constant 0 : i32
    return %c0_i32, %c0_i32_0 : i32, i32
  }
  func.func @transform_2(%arg0: i32) -> (i32, i32) {
    %c0_i32 = arith.constant 0 : i32
    %c0_i32_0 = arith.constant 0 : i32
    %c0_i32_1 = arith.constant 0 : i32
    return %c0_i32, %c0_i32_0 : i32, i32
  }
  func.func @transform_3(%arg0: i32) -> (i32, i32) {
    %c0_i32 = arith.constant 0 : i32
    %c0_i32_0 = arith.constant 0 : i32
    %c0_i32_1 = arith.constant 0 : i32
    return %c0_i32, %c0_i32_0 : i32, i32
  }
  func.func @transform_4(%arg0: i32) -> (i32, i32) {
    %c0_i32 = arith.constant 0 : i32
    %c0_i32_0 = arith.constant 0 : i32
    %c0_i32_1 = arith.constant 0 : i32
    return %c0_i32, %c0_i32_0 : i32, i32
  }
  func.func @transform_5(%arg0: i32) -> (i32, i32) {
    %c0_i32 = arith.constant 0 : i32
    %c0_i32_0 = arith.constant 0 : i32
    return %arg0, %c0_i32 : i32, i32
  }
}

</mosaic_0001>

<llo_original>
// kernel: tpu_custom_call.1
$region0: #{tpu_custom_call.1}
  #allocation0 [shape = 'u32[]', space=smem, size = 0x4, offset = 0x4, fixed_abs, tag = 'smem constant byte address 0x4 - core index']
  #allocation1 [shape = 'u32[144,128]{1,0:T(1,128)}', space=vmem, size = 0x12000, scoped, tag = 'internal scratch']
  %s0 = inlined_call_operand.vmem [shape: f32[32,128], index: 0, kind: input, shape index: {}]
  %s1 = inlined_call_operand.vmem [shape: f32[128,32], index: 1, kind: input, shape index: {}]
  %s2 = inlined_call_operand.vmem [shape: f32[1,32], index: 2, kind: input, shape index: {}]
  %s3 = inlined_call_operand.vmem [shape: f32[1,32], index: 3, kind: input, shape index: {}]
  %s4 = inlined_call_operand.vmem [shape: f32[1,32], index: 4, kind: input, shape index: {}]
  %s5 = inlined_call_operand.hbm [shape: f32[32,32], index: 5, kind: output, shape index: {}]
  %s6 = sld [smem:[#allocation0]]
  $region30: #{tpu_custom_call.1} parent=0
    _
  %s8 = ssub.s32 1, %s6
  %s9 = scalar_select 0, %s8, %s6
  $region1: #{tpu_custom_call.1} parent=0
    #allocation2 [shape = 'u8[16384]{0}', space=vmem, size = 0x4000, scoped, tag = 'output window, operand 0, single buffered']
    #allocation3 [shape = 's32[1]{0}', space=sflag, size = 0x4, scoped, tag = 'scoped memory for tpu_custom_call.1']
    %10 = vsyncpa [#allocation3], 0
    // Predicated region
    $region2: #{tpu_custom_call.1} parent=1 // pred_check
      _
    $region3: #{tpu_custom_call.1} parent=1 // pred_check_branch
      %12 = sbr.rel (0) target = $region5
    $region4: #{tpu_custom_call.1} parent=1 // pred_region
      _
    $region5: #{tpu_custom_call.1} parent=1 // pred_fallthru
      _
    // Predicated region
    $region6: #{tpu_custom_call.1} parent=1 // pred_check
      _
    $region7: #{tpu_custom_call.1} parent=1 // pred_check_branch
      %14 = sbr.rel (0) target = $region9
    $region8: #{tpu_custom_call.1} parent=1 // pred_region
      _
    $region9: #{tpu_custom_call.1} parent=1 // pred_fallthru
      _
    // Predicated region
    $region10: #{tpu_custom_call.1} parent=1 // pred_check
      _
    $region11: #{tpu_custom_call.1} parent=1 // pred_check_branch
      %16 = sbr.rel (0) target = $region13
    $region12: #{tpu_custom_call.1} parent=1 // pred_region
      _
    $region13: #{tpu_custom_call.1} parent=1 // pred_fallthru
      _
    // Predicated region
    $region14: #{tpu_custom_call.1} parent=1 // pred_check
      _
    $region15: #{tpu_custom_call.1} parent=1 // pred_check_branch
      %18 = sbr.rel (0) target = $region17
    $region16: #{tpu_custom_call.1} parent=1 // pred_region
      _
    $region17: #{tpu_custom_call.1} parent=1 // pred_fallthru
      _
    // Predicated region
    $region18: #{tpu_custom_call.1} parent=1 // pred_check
      _
    $region19: #{tpu_custom_call.1} parent=1 // pred_check_branch
      %20 = sbr.rel (0) target = $region21
    $region20: #{tpu_custom_call.1} parent=1 // pred_region
      _
    $region21: #{tpu_custom_call.1} parent=1 // pred_fallthru
      _
    %v21 = vld [vmem:[%s0] sm:$0xff]
    %v22 = vld [vmem:[%s0 + $0x8] sm:$0xff]
    %v23 = vld [vmem:[%s0 + $0x10] sm:$0xff]
    %v24 = vld [vmem:[%s0 + $0x18] sm:$0xff]
    %v25 = vld [vmem:[%s1] sm:$0xff]
    %v26 = vld [vmem:[%s1 + $0x8] sm:$0xff]
    %v27 = vld [vmem:[%s1 + $0x10] sm:$0xff]
    %v28 = vld [vmem:[%s1 + $0x18] sm:$0xff]
    %v29 = vld [vmem:[%s1 + $0x20] sm:$0xff]
    %v30 = vld [vmem:[%s1 + $0x28] sm:$0xff]
    %v31 = vld [vmem:[%s1 + $0x30] sm:$0xff]
    %v32 = vld [vmem:[%s1 + $0x38] sm:$0xff]
    %v33 = vld [vmem:[%s1 + $0x40] sm:$0xff]
    %v34 = vld [vmem:[%s1 + $0x48] sm:$0xff]
    %v35 = vld [vmem:[%s1 + $0x50] sm:$0xff]
    %v36 = vld [vmem:[%s1 + $0x58] sm:$0xff]
    %v37 = vld [vmem:[%s1 + $0x60] sm:$0xff]
    %v38 = vld [vmem:[%s1 + $0x68] sm:$0xff]
    %v39 = vld [vmem:[%s1 + $0x70] sm:$0xff]
    %v40 = vld [vmem:[%s1 + $0x78] sm:$0xff]
    %v41 = vld [vmem:[%s2] sm:$0x1]
    %v43 = vlaneseq
    %v44 = vshrl.u32 %v43, 7
    %v45 = vsub.s32 0, %v44
    %v46 = vrot.slane %v41, %v45
    %48 = vmatprep.subr.mxu0 0.0
    %49 = vmatpush1.msra.mxu0 %v25
    %50 = vmatprep.subr.mxu0 0.0
    %51 = vmatpush1.msra.mxu0 %v26
    %52 = vmatprep.subr.mxu0 0.0
    %53 = vmatpush1.msra.mxu0 %v27
    %54 = vmatprep.subr.mxu0 0.0
    %55 = vmatpush1.msra.mxu0 %v28
    %56 = vmatprep.subr.mxu0 0.0
    %57 = vmatpush1.msra.mxu0 %v29
    %58 = vmatprep.subr.mxu0 0.0
    %59 = vmatpush1.msra.mxu0 %v30
    %60 = vmatprep.subr.mxu0 0.0
    %61 = vmatpush1.msra.mxu0 %v31
    %62 = vmatprep.subr.mxu0 0.0
    %63 = vmatpush1.msra.mxu0 %v32
    %64 = vmatprep.subr.mxu0 0.0
    %65 = vmatpush1.msra.mxu0 %v33
    %66 = vmatprep.subr.mxu0 0.0
    %67 = vmatpush1.msra.mxu0 %v34
    %68 = vmatprep.subr.mxu0 0.0
    %69 = vmatpush1.msra.mxu0 %v35
    %70 = vmatprep.subr.mxu0 0.0
    %71 = vmatpush1.msra.mxu0 %v36
    %72 = vmatprep.subr.mxu0 0.0
    %73 = vmatpush1.msra.mxu0 %v37
    %74 = vmatprep.subr.mxu0 0.0
    %75 = vmatpush1.msra.mxu0 %v38
    %76 = vmatprep.subr.mxu0 0.0
    %77 = vmatpush1.msra.mxu0 %v39
    %78 = vmatprep.subr.mxu0 0.0
    %79 = vmatpush1.msra.mxu0 %v40
    %80 = vmatprep.subr.mxu0 0.0
    %81 = vmatpush1.msra.mxu0 0.0
    %82 = vmatprep.subr.mxu0 0.0
    %83 = vmatpush1.msra.mxu0 0.0
    %84 = vmatprep.subr.mxu0 0.0
    %85 = vmatpush1.msra.mxu0 0.0
    %86 = vmatprep.subr.mxu0 0.0
    %87 = vmatpush1.msra.mxu0 0.0
    %88 = vmatprep.subr.mxu0 0.0
    %89 = vmatpush1.msra.mxu0 0.0
    %90 = vmatprep.subr.mxu0 0.0
    %91 = vmatpush1.msra.mxu0 0.0
    %92 = vmatprep.subr.mxu0 0.0
    %93 = vmatpush1.msra.mxu0 0.0
    %94 = vmatprep.subr.mxu0 0.0
    %95 = vmatpush1.msra.mxu0 0.0
    %96 = vmatprep.subr.mxu0 0.0
    %97 = vmatpush1.msra.mxu0 0.0
    %98 = vmatprep.subr.mxu0 0.0
    %99 = vmatpush1.msra.mxu0 0.0
    %100 = vmatprep.subr.mxu0 0.0
    %101 = vmatpush1.msra.mxu0 0.0
    %102 = vmatprep.subr.mxu0 0.0
    %103 = vmatpush1.msra.mxu0 0.0
    %104 = vmatprep.subr.mxu0 0.0
    %105 = vmatpush1.msra.mxu0 0.0
    %106 = vmatprep.subr.mxu0 0.0
    %107 = vmatpush1.msra.mxu0 0.0
    %108 = vmatprep.subr.mxu0 0.0
    %109 = vmatpush1.msra.mxu0 0.0
    %110 = vmatprep.subr.mxu0 0.0
    %111 = vmatpush1.msra.mxu0 0.0
    %112 = vmatprep.mubr.f32.mxu0 0.0
    %113 = vmatmul.mubr.f32.gmra.mrb[0].mxu0 %v21
    %v114 = vpop.f32.mrb[0].mxu0
    %v115 = vadd.f32 %v46, %v114
    %v116 = vpop.f32.mrb[0].mxu0
    %117 = vmatprep.mubr.f32.mxu0 0.0
    %118 = vmatmul.mubr.f32.gmra.mrb[0].mxu0 %v22
    %v119 = vpop.f32.mrb[0].mxu0
    %v120 = vadd.f32 %v46, %v119
    %v121 = vpop.f32.mrb[0].mxu0
    %122 = vmatprep.mubr.f32.mxu0 0.0
    %123 = vmatmul.mubr.f32.gmra.mrb[0].mxu0 %v23
    %v124 = vpop.f32.mrb[0].mxu0
    %v125 = vadd.f32 %v46, %v124
    %v126 = vpop.f32.mrb[0].mxu0
    %127 = vmatprep.mubr.f32.mxu0 0.0
    %128 = vmatmul.mubr.f32.gmra.mrb[0].mxu0 %v24
    %v129 = vpop.f32.mrb[0].mxu0
    %v130 = vadd.f32 %v46, %v129
    %v131 = vpop.f32.mrb[0].mxu0
    %132 = vdwg.mxu0
    %vm133 = vcmask 261120
    %v134 = vsel %vm133, %v115, 0.0
    %135 = vadd.xlane.f32.xlu0 %v134
    %v136 = vpop.xlane.xlu0 %135
    %v137 = vsel %vm133, %v120, 0.0
    %138 = vadd.xlane.f32.xlu0 %v137
    %v139 = vpop.xlane.xlu0 %138
    %v140 = vsel %vm133, %v125, 0.0
    %141 = vadd.xlane.f32.xlu0 %v140
    %v142 = vpop.xlane.xlu0 %141
    %v143 = vsel %vm133, %v130, 0.0
    %144 = vadd.xlane.f32.xlu0 %v143
    %v145 = vpop.xlane.xlu0 %144
    %v146 = vrcp.pop 32.0
    %v147 = vmul.f32 %v136, %v146
    %v148 = vmul.f32 %v139, %v146
    %v149 = vmul.f32 %v142, %v146
    %v150 = vmul.f32 %v145, %v146
    %v151 = vsub.f32 %v115, %v147
    %v152 = vsub.f32 %v120, %v148
    %v153 = vsub.f32 %v125, %v149
    %v154 = vsub.f32 %v130, %v150
    %v155 = vmul.f32 %v151, %v151
    %v156 = vmul.f32 %v152, %v152
    %v157 = vmul.f32 %v153, %v153
    %v158 = vmul.f32 %v154, %v154
    %v159 = vsel %vm133, %v155, 0.0
    %160 = vadd.xlane.f32.xlu0 %v159
    %v161 = vpop.xlane.xlu0 %160
    %v162 = vsel %vm133, %v156, 0.0
    %163 = vadd.xlane.f32.xlu0 %v162
    %v164 = vpop.xlane.xlu0 %163
    %v165 = vsel %vm133, %v157, 0.0
    %166 = vadd.xlane.f32.xlu0 %v165
    %v167 = vpop.xlane.xlu0 %166
    %v168 = vsel %vm133, %v158, 0.0
    %169 = vadd.xlane.f32.xlu0 %v168
    %v170 = vpop.xlane.xlu0 %169
    %v171 = vmul.f32 %v161, %v146
    %v172 = vmul.f32 %v164, %v146
    %v173 = vmul.f32 %v167, %v146
    %v174 = vmul.f32 %v170, %v146
    %v175 = vadd.f32 %v171, 1e-05
    %v176 = vadd.f32 %v172, 1e-05
    %v177 = vadd.f32 %v173, 1e-05
    %v178 = vadd.f32 %v174, 1e-05
    %v179 = vrsqrt.pop %v175
    %v180 = vrsqrt.pop %v176
    %v181 = vrsqrt.pop %v177
    %v182 = vrsqrt.pop %v178
    %v183 = vmul.f32 %v151, %v179
    %v184 = vmul.f32 %v152, %v180
    %v185 = vmul.f32 %v153, %v181
    %v186 = vmul.f32 %v154, %v182
    %v187 = vld [vmem:[%s3] sm:$0x1]
    %v189 = vlaneseq
    %v190 = vshrl.u32 %v189, 7
    %v191 = vsub.s32 0, %v190
    %v192 = vrot.slane %v187, %v191
    %v194 = vmul.f32 %v183, %v192
    %v195 = vmul.f32 %v184, %v192
    %v196 = vmul.f32 %v185, %v192
    %v197 = vmul.f32 %v186, %v192
    %v198 = vld [vmem:[%s4] sm:$0x1]
    %v200 = vlaneseq
    %v201 = vshrl.u32 %v200, 7
    %v202 = vsub.s32 0, %v201
    %v203 = vrot.slane %v198, %v202
    %v205 = vadd.f32 %v194, %v203
    %v206 = vadd.f32 %v195, %v203
    %v207 = vadd.f32 %v196, %v203
    %v208 = vadd.f32 %v197, %v203
    %209 = vst.msk [vmem:[#allocation2] sm:$0xff] %vm133, %v205
    %210 = vst.msk [vmem:[#allocation2 + $0x8] sm:$0xff] %vm133, %v206
    %211 = vst.msk [vmem:[#allocation2 + $0x10] sm:$0xff] %vm133, %v207
    %212 = vst.msk [vmem:[#allocation2 + $0x18] sm:$0xff] %vm133, %v208
    // Predicated region
    $region22: #{tpu_custom_call.1} parent=1 // pred_check
      _
    $region23: #{tpu_custom_call.1} parent=1 // pred_check_branch
      %214 = sbr.rel (0) target = $region25
    $region24: #{tpu_custom_call.1} parent=1 // pred_region
      %s216 = ssub.s32 512, 512
      %217 = vsyncadd [#allocation3], %s216
      %s218 = sshll.u32 [#allocation2], 4
      %s219 = int_to_ptr.vmem [resolvable:$true] %s218
      %224 = dma.vmem_to_hbm [thread:$0]  %s219, 512, %s5, [#allocation3], 128, 128, 8
    $region25: #{tpu_custom_call.1} parent=1 // pred_fallthru
      _
    // Predicated region
    $region26: #{tpu_custom_call.1} parent=1 // pred_check
      _
    $region27: #{tpu_custom_call.1} parent=1 // pred_check_branch
      %226 = sbr.rel (0) target = $region29
    $region28: #{tpu_custom_call.1} parent=1 // pred_region
      %227 = dma.done [#allocation3], 512
    $region29: #{tpu_custom_call.1} parent=1 // pred_fallthru
      _
    %228 = vsyncpa [#allocation3], 1

</llo_original>
